<compile_context>
chip_gen: v7x
topology: tpu7x:2x2x1
jax: 0.10.0
libtpu: 0.0.40
codegen_flags: <defaults>
</compile_context>

<pallas_src>
import jax
import jax.numpy as jnp
from jax.experimental import pallas as pl
from jax.experimental.pallas import tpu as pltpu

SCALES = (4, 8, 16, 32)
NEG_SLOPE = 0.2  # LeakyReLU(0.2)


def _leaky(v):
    return jnp.where(v > 0, v, NEG_SLOPE * v)


def _make_kernel(nb, c_in, c_out, n_s, h, w, cdt):
    nbh = nb * h

    def kernel(x_ref, a_stack_ref, m_stage_ref, diag_mask_ref,
               m_bcat_ref, bias_ref, o_ref, slab_ref):
        # x_ref       : (nb, C_in, H, W)        input dtype, NCHW block
        # a_stack_ref : (S*nb*H, nb*H)    bf16  stacked per-scale block-diag(A_s)
        # m_stage_ref : (C_in*W, S*W)     bf16  block (c,t) = w_stage[t,c] * A_t
        # diag_mask_ref:(S*nb*H, S*W)     bf16  1 on the (s == t) blocks
        # m_bcat_ref  : ((S+C_in)*W, C_out*W) bf16  bottleneck 1x1 conv blocks
        # bias_ref    : (1, C_out*W)      f32
        # o_ref       : (nb, C_out, H, W)       NCHW output block
        # slab_ref    : (nb*H, C_in*W)    bf16  VMEM scratch (lane-packed feats)

        # 1) Assemble lane-dense slab: slab[b*H + i, c*W + j] = x[b, c, i, j].
        xv = x_ref[...].astype(cdt)                       # (nb, C_in, H, W)
        for c in range(c_in):
            slab_ref[:, c * w:(c + 1) * w] = xv[:, c].reshape(nbh, w)
        x_slab = slab_ref[...]                            # (nb*H, C_in*W)

        # 2) Pyramid stages, channel fold first (fewer MACs), batched over nb:
        #    z[b*H+i, t*W+j]   = sum_c w_stage[t,c] * (x[b,c] @ A_t)[i, j]
        #    r[(s,b,i),(t,j)]  = (A_s @ z_block(b,t))[i, j]; keep s == t blocks.
        z = jnp.dot(x_slab, m_stage_ref[...],
                    preferred_element_type=jnp.float32)   # (nb*H, S*W)
        r = jnp.dot(a_stack_ref[...], z.astype(cdt),
                    preferred_element_type=jnp.float32)   # (S*nb*H, S*W)
        r = r * diag_mask_ref[...]                        # bf16 mask, promoted
        p_pre = r[0:nbh, :]
        for s in range(1, n_s):
            p_pre = p_pre + r[s * nbh:(s + 1) * nbh, :]
        p_act = _leaky(p_pre)                             # (nb*H, S*W)

        # 3) Fused bottleneck 1x1 conv over cat([priors, feats]) + bias + leaky,
        #    single MXU matmul with K = (S + C_in) * W.
        act = jnp.concatenate([p_act.astype(cdt), x_slab], axis=-1)
        acc = jnp.dot(act, m_bcat_ref[...],
                      preferred_element_type=jnp.float32)  # (nb*H, C_out*W)
        out = _leaky(acc + bias_ref[...])

        # 4) Scatter back to NCHW (VMEM block stores; HBM writeback stays
        #    a contiguous (nb, C_out, H, W) DMA handled by Pallas).
        for b in range(nb):
            for o in range(c_out):
                o_ref[b, o] = out[b * h:(b + 1) * h,
                                  o * w:(o + 1) * w].astype(o_ref.dtype)

    return kernel


def pyramid_pooling(x, w_stage, w_bottleneck, b_bottleneck, *,
                    scales=SCALES, batch_per_step=1,
                    compute_dtype=jnp.bfloat16, out_dtype=None):
    """PyramidPooling forward.  x: (N, C_in, H, W) NCHW; output NCHW.

    batch_per_step: batch elements folded into one grid step.  Keep
    N // batch_per_step >= 2 on v7x (dual TensorCore); raise it (16-32) on
    single-TC v5e/v6e to amortize per-step pipeline overhead.
    """
    N, C_in, H, W = x.shape
    S = len(scales)
    C_out, C_cat = w_bottleneck.shape
    assert C_cat == S + C_in
    assert H == W, "kernel shares one symmetric pooling operator across H and W"
    assert all(H % s == 0 for s in scales)
    assert N % batch_per_step == 0
    nb = batch_per_step
    out_dtype = x.dtype if out_dtype is None else out_dtype
    f32 = jnp.float32

    def pool_mat(n, s):
        blk = jnp.arange(n) // s
        return (blk[:, None] == blk[None, :]).astype(f32) / s

    # Fused "avgpool(s) then nearest-upsample back" operator per scale.
    A = jnp.stack([pool_mat(H, s) for s in scales])                 # (S, H, H)

    # Left operator: per scale, block-diagonal over the nb batch elements,
    # scales stacked along sublanes.
    eye_nb = jnp.eye(nb, dtype=f32)
    a_stack = jnp.concatenate(
        [jnp.kron(eye_nb, A[s]) for s in range(S)], axis=0
    ).astype(compute_dtype)                                         # (S*nb*H, nb*H)

    # Stage 1x1-conv fold + right pooling operator: block (c,t) = w_stage[t,c]*A_t.
    m_stage = (jnp.einsum('tc,tuw->cutw', w_stage.astype(f32), A)
               .reshape(C_in * W, S * W).astype(compute_dtype))     # (C_in*W, S*W)

    # Block-diagonal selector for the (s == t) blocks (0/1 exact in bf16).
    diag_mask = jnp.kron(jnp.eye(S, dtype=f32),
                         jnp.ones((nb * H, W), f32)).astype(compute_dtype)

    # Fused bottleneck 1x1 conv: rows ordered [S prior blocks, C_in feat blocks],
    # block (j,o) = w_b[o, j] * I_W, matching the torch cat([priors..., feats]).
    eye_w = jnp.eye(W, dtype=f32)
    m_bcat = (jnp.einsum('oj,uw->juow', w_bottleneck.astype(f32), eye_w)
              .reshape((S + C_in) * W, C_out * W)
              .astype(compute_dtype))                               # (256, C_out*W)
    bias_row = jnp.repeat(b_bottleneck.astype(f32), W).reshape(1, C_out * W)

    kernel = _make_kernel(nb, C_in, C_out, S, H, W, compute_dtype)

    return pl.pallas_call(
        kernel,
        out_shape=jax.ShapeDtypeStruct((N, C_out, H, W), out_dtype),
        grid=(N // nb,),
        in_specs=[
            pl.BlockSpec((nb, C_in, H, W), lambda i: (i, 0, 0, 0)),       # feats (NCHW)
            pl.BlockSpec((S * nb * H, nb * H), lambda i: (0, 0)),         # A stack
            pl.BlockSpec((C_in * W, S * W), lambda i: (0, 0)),            # stage matrix
            pl.BlockSpec((S * nb * H, S * W), lambda i: (0, 0)),          # diag mask
            pl.BlockSpec(((S + C_in) * W, C_out * W), lambda i: (0, 0)),  # bottleneck
            pl.BlockSpec((1, C_out * W), lambda i: (0, 0)),               # bias row
        ],
        out_specs=pl.BlockSpec((nb, C_out, H, W), lambda i: (i, 0, 0, 0)),
        scratch_shapes=[pltpu.VMEM((nb * H, C_in * W), compute_dtype)],
        compiler_params=pltpu.CompilerParams(
            dimension_semantics=("parallel",)),
    )(x, a_stack, m_stage, diag_mask, m_bcat, bias_row)


def pyramid_pooling_ref(x, w_stage, w_bottleneck, b_bottleneck, scales=SCALES):
    """Pure-JAX reference mirroring the PyTorch forward."""
    N, C, H, W = x.shape
    priors = []
    for i, s in enumerate(scales):
        pooled = x.reshape(N, C, H // s, s, W // s, s).mean(axis=(3, 5))   # AvgPool2d(s)
        conv = jnp.einsum('c,nchw->nhw', w_stage[i], pooled)               # 1x1 conv, no bias
        act = jnp.where(conv > 0, conv, NEG_SLOPE * conv)                  # LeakyReLU(0.2)
        up = jnp.repeat(jnp.repeat(act, s, axis=1), s, axis=2)             # nearest upsample
        priors.append(up[:, None])
    cat = jnp.concatenate(priors + [x], axis=1)
    out = (jnp.einsum('oc,nchw->nohw', w_bottleneck, cat)
           + b_bottleneck[None, :, None, None])
    return jnp.where(out > 0, out, NEG_SLOPE * out)


if __name__ == "__main__":
    # H, W must be >= max(scale) = 32 for AvgPool2d(32) to be valid, so the
    # smallest consistent spatial size is 32x32.
    N, C_in, C_out, H, W = 2, 4, 8, 32, 32
    S = len(SCALES)

    key = jax.random.PRNGKey(0)
    k1, k2, k3, k4 = jax.random.split(key, 4)
    x = jax.random.normal(k1, (N, C_in, H, W), jnp.float32)
    # stage convs are (1, C_in, 1, 1) each -> (S, C_in); bottleneck is (C_out, S + C_in)
    w_stage = jax.random.normal(k2, (S, C_in), jnp.float32) * 0.5
    w_bottleneck = jax.random.normal(k3, (C_out, S + C_in), jnp.float32) * 0.3
    b_bottleneck = jax.random.normal(k4, (C_out,), jnp.float32) * 0.1

    ref = pyramid_pooling_ref(x, w_stage, w_bottleneck, b_bottleneck)

    # batch_per_step=1 -> grid=(2,): both v7x TensorCores busy.
    # batch_per_step=N -> grid=(1,): single-TC v5e/v6e batching mode (M = N*H).
    for nb_cfg in (1, N):
        out = jax.block_until_ready(
            pyramid_pooling(x, w_stage, w_bottleneck, b_bottleneck,
                            batch_per_step=nb_cfg))
        assert out.shape == (N, C_out, H, W), out.shape
        if not jnp.allclose(out, ref, atol=5e-2, rtol=5e-2):
            raise AssertionError(
                f"mismatch (batch_per_step={nb_cfg}): "
                f"max abs diff {float(jnp.max(jnp.abs(out - ref)))}")
    print("KERNEL_OK")
</pallas_src>

<mosaic_0001>
module attributes {stable_mosaic.version = 11 : i64} {
  func.func @kernel(%arg0: i32, %arg1: memref<1x4x32x32xf32, #tpu.memory_space<vmem>>, %arg2: memref<128x32xbf16, #tpu.memory_space<vmem>>, %arg3: memref<128x128xbf16, #tpu.memory_space<vmem>>, %arg4: memref<128x128xbf16, #tpu.memory_space<vmem>>, %arg5: memref<256x256xbf16, #tpu.memory_space<vmem>>, %arg6: memref<1x256xf32, #tpu.memory_space<vmem>>, %arg7: memref<1x8x32x32xf32, #tpu.memory_space<vmem>>, %arg8: memref<32x128xbf16, #tpu.memory_space<vmem>>) attributes {dimension_semantics = [#tpu.dimension_semantics<parallel>], iteration_bounds = array<i64: 2>, scalar_prefetch = 0 : i64, scratch_operands = 1 : i64, tpu.core_type = #tpu.core_type<tc>, window_params = [{transform_indices = @transform_0, window_bounds = array<i64: 1, 4, 32, 32>}, {pipeline_mode = #tpu.pipeline_mode<synchronous>, transform_indices = @transform_1, window_bounds = array<i64: 128, 32>}, {pipeline_mode = #tpu.pipeline_mode<synchronous>, transform_indices = @transform_2, window_bounds = array<i64: 128, 128>}, {pipeline_mode = #tpu.pipeline_mode<synchronous>, transform_indices = @transform_3, window_bounds = array<i64: 128, 128>}, {pipeline_mode = #tpu.pipeline_mode<synchronous>, transform_indices = @transform_4, window_bounds = array<i64: 256, 256>}, {pipeline_mode = #tpu.pipeline_mode<synchronous>, transform_indices = @transform_5, window_bounds = array<i64: 1, 256>}, {transform_indices = @transform_6, window_bounds = array<i64: 1, 8, 32, 32>}]} {
    %c0 = arith.constant 0 : index
    %c0_0 = arith.constant 0 : index
    %c0_1 = arith.constant 0 : index
    %c0_2 = arith.constant 0 : index
    %0 = vector.load %arg1[%c0, %c0_0, %c0_1, %c0_2] : memref<1x4x32x32xf32, #tpu.memory_space<vmem>>, vector<1x4x32x32xf32>
    %1 = arith.truncf %0 : vector<1x4x32x32xf32> to vector<1x4x32x32xbf16>
    %2 = vector.extract_strided_slice %1 {offsets = [0, 0, 0, 0], sizes = [1, 1, 32, 32], strides = [1, 1, 1, 1]} : vector<1x4x32x32xbf16> to vector<1x1x32x32xbf16>
    %3 = vector.shape_cast %2 : vector<1x1x32x32xbf16> to vector<1x32x32xbf16>
    %4 = vector.shape_cast %3 : vector<1x32x32xbf16> to vector<32x32xbf16>
    %c0_3 = arith.constant 0 : index
    %c0_4 = arith.constant 0 : index
    %5 = vector.load %arg8[%c0_3, %c0_4] : memref<32x128xbf16, #tpu.memory_space<vmem>>, vector<32x32xbf16>
    tpu.vector_store %arg8[%c0_3, %c0_4], %4 {strides = array<i32>} : memref<32x128xbf16, #tpu.memory_space<vmem>>, vector<32x32xbf16>,
    %6 = vector.extract_strided_slice %1 {offsets = [0, 1, 0, 0], sizes = [1, 1, 32, 32], strides = [1, 1, 1, 1]} : vector<1x4x32x32xbf16> to vector<1x1x32x32xbf16>
    %7 = vector.shape_cast %6 : vector<1x1x32x32xbf16> to vector<1x32x32xbf16>
    %8 = vector.shape_cast %7 : vector<1x32x32xbf16> to vector<32x32xbf16>
    %c0_5 = arith.constant 0 : index
    %c32 = arith.constant 32 : index
    %9 = vector.load %arg8[%c0_5, %c32] : memref<32x128xbf16, #tpu.memory_space<vmem>>, vector<32x32xbf16>
    tpu.vector_store %arg8[%c0_5, %c32], %8 {strides = array<i32>} : memref<32x128xbf16, #tpu.memory_space<vmem>>, vector<32x32xbf16>,
    %10 = vector.extract_strided_slice %1 {offsets = [0, 2, 0, 0], sizes = [1, 1, 32, 32], strides = [1, 1, 1, 1]} : vector<1x4x32x32xbf16> to vector<1x1x32x32xbf16>
    %11 = vector.shape_cast %10 : vector<1x1x32x32xbf16> to vector<1x32x32xbf16>
    %12 = vector.shape_cast %11 : vector<1x32x32xbf16> to vector<32x32xbf16>
    %c0_6 = arith.constant 0 : index
    %c64 = arith.constant 64 : index
    %13 = vector.load %arg8[%c0_6, %c64] : memref<32x128xbf16, #tpu.memory_space<vmem>>, vector<32x32xbf16>
    tpu.vector_store %arg8[%c0_6, %c64], %12 {strides = array<i32>} : memref<32x128xbf16, #tpu.memory_space<vmem>>, vector<32x32xbf16>,
    %14 = vector.extract_strided_slice %1 {offsets = [0, 3, 0, 0], sizes = [1, 1, 32, 32], strides = [1, 1, 1, 1]} : vector<1x4x32x32xbf16> to vector<1x1x32x32xbf16>
    %15 = vector.shape_cast %14 : vector<1x1x32x32xbf16> to vector<1x32x32xbf16>
    %16 = vector.shape_cast %15 : vector<1x32x32xbf16> to vector<32x32xbf16>
    %c0_7 = arith.constant 0 : index
    %c96 = arith.constant 96 : index
    %17 = vector.load %arg8[%c0_7, %c96] : memref<32x128xbf16, #tpu.memory_space<vmem>>, vector<32x32xbf16>
    tpu.vector_store %arg8[%c0_7, %c96], %16 {strides = array<i32>} : memref<32x128xbf16, #tpu.memory_space<vmem>>, vector<32x32xbf16>,
    %c0_8 = arith.constant 0 : index
    %c0_9 = arith.constant 0 : index
    %18 = vector.load %arg8[%c0_8, %c0_9] : memref<32x128xbf16, #tpu.memory_space<vmem>>, vector<32x128xbf16>
    %c0_10 = arith.constant 0 : index
    %c0_11 = arith.constant 0 : index
    %19 = vector.load %arg3[%c0_10, %c0_11] : memref<128x128xbf16, #tpu.memory_space<vmem>>, vector<128x128xbf16>
    %cst = arith.constant dense<0.000000e+00> : vector<32x128xf32>
    %20 = tpu.matmul %18, %19, %cst {dimension_numbers = #tpu.dot_dimension_numbers<[1], [0], [0], [1], [0, 0, 1, 1], [], []>} : vector<32x128xbf16>, vector<128x128xbf16>, vector<32x128xf32> -> vector<32x128xf32>
    %c0_12 = arith.constant 0 : index
    %c0_13 = arith.constant 0 : index
    %21 = vector.load %arg2[%c0_12, %c0_13] : memref<128x32xbf16, #tpu.memory_space<vmem>>, vector<128x32xbf16>
    %22 = arith.truncf %20 : vector<32x128xf32> to vector<32x128xbf16>
    %cst_14 = arith.constant dense<0.000000e+00> : vector<128x128xf32>
    %23 = tpu.matmul %21, %22, %cst_14 {dimension_numbers = #tpu.dot_dimension_numbers<[1], [0], [0], [1], [0, 0, 1, 1], [], []>} : vector<128x32xbf16>, vector<32x128xbf16>, vector<128x128xf32> -> vector<128x128xf32>
    %c0_15 = arith.constant 0 : index
    %c0_16 = arith.constant 0 : index
    %24 = vector.load %arg4[%c0_15, %c0_16] : memref<128x128xbf16, #tpu.memory_space<vmem>>, vector<128x128xbf16>
    %25 = arith.extf %24 : vector<128x128xbf16> to vector<128x128xf32>
    %26 = arith.mulf %23, %25 : vector<128x128xf32>
    %27 = vector.extract_strided_slice %26 {offsets = [0, 0], sizes = [32, 128], strides = [1, 1]} : vector<128x128xf32> to vector<32x128xf32>
    %28 = vector.extract_strided_slice %26 {offsets = [32, 0], sizes = [32, 128], strides = [1, 1]} : vector<128x128xf32> to vector<32x128xf32>
    %29 = arith.addf %27, %28 : vector<32x128xf32>
    %30 = vector.extract_strided_slice %26 {offsets = [64, 0], sizes = [32, 128], strides = [1, 1]} : vector<128x128xf32> to vector<32x128xf32>
    %31 = arith.addf %29, %30 : vector<32x128xf32>
    %32 = vector.extract_strided_slice %26 {offsets = [96, 0], sizes = [32, 128], strides = [1, 1]} : vector<128x128xf32> to vector<32x128xf32>
    %33 = arith.addf %31, %32 : vector<32x128xf32>
    %cst_17 = arith.constant 0.000000e+00 : f32
    %34 = vector.broadcast %cst_17 : f32 to vector<32x128xf32>
    %35 = arith.cmpf ogt, %33, %34 : vector<32x128xf32>
    %cst_18 = arith.constant 2.000000e-01 : f32
    %36 = vector.broadcast %cst_18 : f32 to vector<32x128xf32>
    %37 = arith.mulf %36, %33 : vector<32x128xf32>
    %38 = arith.select %35, %33, %37 : vector<32x128xi1>, vector<32x128xf32>
    %39 = arith.truncf %38 : vector<32x128xf32> to vector<32x128xbf16>
    %40 = tpu.concatenate %39, %18 in 1 : vector<32x128xbf16>, vector<32x128xbf16> -> vector<32x256xbf16>
    %c0_19 = arith.constant 0 : index
    %c0_20 = arith.constant 0 : index
    %41 = vector.load %arg5[%c0_19, %c0_20] : memref<256x256xbf16, #tpu.memory_space<vmem>>, vector<256x256xbf16>
    %cst_21 = arith.constant dense<0.000000e+00> : vector<32x256xf32>
    %42 = tpu.matmul %40, %41, %cst_21 {dimension_numbers = #tpu.dot_dimension_numbers<[1], [0], [0], [1], [0, 0, 1, 1], [], []>} : vector<32x256xbf16>, vector<256x256xbf16>, vector<32x256xf32> -> vector<32x256xf32>
    %c0_22 = arith.constant 0 : index
    %c0_23 = arith.constant 0 : index
    %43 = vector.load %arg6[%c0_22, %c0_23] : memref<1x256xf32, #tpu.memory_space<vmem>>, vector<1x256xf32>
    %44 = vector.broadcast %43 : vector<1x256xf32> to vector<32x256xf32>
    %45 = arith.addf %42, %44 : vector<32x256xf32>
    %cst_24 = arith.constant 0.000000e+00 : f32
    %46 = vector.broadcast %cst_24 : f32 to vector<32x256xf32>
    %47 = arith.cmpf ogt, %45, %46 : vector<32x256xf32>
    %cst_25 = arith.constant 2.000000e-01 : f32
    %48 = vector.broadcast %cst_25 : f32 to vector<32x256xf32>
    %49 = arith.mulf %48, %45 : vector<32x256xf32>
    %50 = arith.select %47, %45, %49 : vector<32x256xi1>, vector<32x256xf32>
    %51 = vector.extract_strided_slice %50 {offsets = [0, 0], sizes = [32, 32], strides = [1, 1]} : vector<32x256xf32> to vector<32x32xf32>
    %c0_26 = arith.constant 0 : index
    %c0_27 = arith.constant 0 : index
    %c0_28 = arith.constant 0 : index
    %c0_29 = arith.constant 0 : index
    %52 = vector.load %arg7[%c0_26, %c0_27, %c0_28, %c0_29] : memref<1x8x32x32xf32, #tpu.memory_space<vmem>>, vector<1x1x32x32xf32>
    %53 = vector.shape_cast %52 : vector<1x1x32x32xf32> to vector<32x32xf32>
    %54 = vector.shape_cast %51 : vector<32x32xf32> to vector<1x1x32x32xf32>
    tpu.vector_store %arg7[%c0_26, %c0_27, %c0_28, %c0_29], %54 {strides = array<i32>} : memref<1x8x32x32xf32, #tpu.memory_space<vmem>>, vector<1x1x32x32xf32>,
    %55 = vector.extract_strided_slice %50 {offsets = [0, 32], sizes = [32, 32], strides = [1, 1]} : vector<32x256xf32> to vector<32x32xf32>
    %c0_30 = arith.constant 0 : index
    %c1 = arith.constant 1 : index
    %c0_31 = arith.constant 0 : index
    %c0_32 = arith.constant 0 : index
    %56 = vector.load %arg7[%c0_30, %c1, %c0_31, %c0_32] : memref<1x8x32x32xf32, #tpu.memory_space<vmem>>, vector<1x1x32x32xf32>
    %57 = vector.shape_cast %56 : vector<1x1x32x32xf32> to vector<32x32xf32>
    %58 = vector.shape_cast %55 : vector<32x32xf32> to vector<1x1x32x32xf32>
    tpu.vector_store %arg7[%c0_30, %c1, %c0_31, %c0_32], %58 {strides = array<i32>} : memref<1x8x32x32xf32, #tpu.memory_space<vmem>>, vector<1x1x32x32xf32>,
    %59 = vector.extract_strided_slice %50 {offsets = [0, 64], sizes = [32, 32], strides = [1, 1]} : vector<32x256xf32> to vector<32x32xf32>
    %c0_33 = arith.constant 0 : index
    %c2 = arith.constant 2 : index
    %c0_34 = arith.constant 0 : index
    %c0_35 = arith.constant 0 : index
    %60 = vector.load %arg7[%c0_33, %c2, %c0_34, %c0_35] : memref<1x8x32x32xf32, #tpu.memory_space<vmem>>, vector<1x1x32x32xf32>
    %61 = vector.shape_cast %60 : vector<1x1x32x32xf32> to vector<32x32xf32>
    %62 = vector.shape_cast %59 : vector<32x32xf32> to vector<1x1x32x32xf32>
    tpu.vector_store %arg7[%c0_33, %c2, %c0_34, %c0_35], %62 {strides = array<i32>} : memref<1x8x32x32xf32, #tpu.memory_space<vmem>>, vector<1x1x32x32xf32>,
    %63 = vector.extract_strided_slice %50 {offsets = [0, 96], sizes = [32, 32], strides = [1, 1]} : vector<32x256xf32> to vector<32x32xf32>
    %c0_36 = arith.constant 0 : index
    %c3 = arith.constant 3 : index
    %c0_37 = arith.constant 0 : index
    %c0_38 = arith.constant 0 : index
    %64 = vector.load %arg7[%c0_36, %c3, %c0_37, %c0_38] : memref<1x8x32x32xf32, #tpu.memory_space<vmem>>, vector<1x1x32x32xf32>
    %65 = vector.shape_cast %64 : vector<1x1x32x32xf32> to vector<32x32xf32>
    %66 = vector.shape_cast %63 : vector<32x32xf32> to vector<1x1x32x32xf32>
    tpu.vector_store %arg7[%c0_36, %c3, %c0_37, %c0_38], %66 {strides = array<i32>} : memref<1x8x32x32xf32, #tpu.memory_space<vmem>>, vector<1x1x32x32xf32>,
    %67 = vector.extract_strided_slice %50 {offsets = [0, 128], sizes = [32, 32], strides = [1, 1]} : vector<32x256xf32> to vector<32x32xf32>
    %c0_39 = arith.constant 0 : index
    %c4 = arith.constant 4 : index
    %c0_40 = arith.constant 0 : index
    %c0_41 = arith.constant 0 : index
    %68 = vector.load %arg7[%c0_39, %c4, %c0_40, %c0_41] : memref<1x8x32x32xf32, #tpu.memory_space<vmem>>, vector<1x1x32x32xf32>
    %69 = vector.shape_cast %68 : vector<1x1x32x32xf32> to vector<32x32xf32>
    %70 = vector.shape_cast %67 : vector<32x32xf32> to vector<1x1x32x32xf32>
    tpu.vector_store %arg7[%c0_39, %c4, %c0_40, %c0_41], %70 {strides = array<i32>} : memref<1x8x32x32xf32, #tpu.memory_space<vmem>>, vector<1x1x32x32xf32>,
    %71 = vector.extract_strided_slice %50 {offsets = [0, 160], sizes = [32, 32], strides = [1, 1]} : vector<32x256xf32> to vector<32x32xf32>
    %c0_42 = arith.constant 0 : index
    %c5 = arith.constant 5 : index
    %c0_43 = arith.constant 0 : index
    %c0_44 = arith.constant 0 : index
    %72 = vector.load %arg7[%c0_42, %c5, %c0_43, %c0_44] : memref<1x8x32x32xf32, #tpu.memory_space<vmem>>, vector<1x1x32x32xf32>
    %73 = vector.shape_cast %72 : vector<1x1x32x32xf32> to vector<32x32xf32>
    %74 = vector.shape_cast %71 : vector<32x32xf32> to vector<1x1x32x32xf32>
    tpu.vector_store %arg7[%c0_42, %c5, %c0_43, %c0_44], %74 {strides = array<i32>} : memref<1x8x32x32xf32, #tpu.memory_space<vmem>>, vector<1x1x32x32xf32>,
    %75 = vector.extract_strided_slice %50 {offsets = [0, 192], sizes = [32, 32], strides = [1, 1]} : vector<32x256xf32> to vector<32x32xf32>
    %c0_45 = arith.constant 0 : index
    %c6 = arith.constant 6 : index
    %c0_46 = arith.constant 0 : index
    %c0_47 = arith.constant 0 : index
    %76 = vector.load %arg7[%c0_45, %c6, %c0_46, %c0_47] : memref<1x8x32x32xf32, #tpu.memory_space<vmem>>, vector<1x1x32x32xf32>
    %77 = vector.shape_cast %76 : vector<1x1x32x32xf32> to vector<32x32xf32>
    %78 = vector.shape_cast %75 : vector<32x32xf32> to vector<1x1x32x32xf32>
    tpu.vector_store %arg7[%c0_45, %c6, %c0_46, %c0_47], %78 {strides = array<i32>} : memref<1x8x32x32xf32, #tpu.memory_space<vmem>>, vector<1x1x32x32xf32>,
    %79 = vector.extract_strided_slice %50 {offsets = [0, 224], sizes = [32, 32], strides = [1, 1]} : vector<32x256xf32> to vector<32x32xf32>
    %c0_48 = arith.constant 0 : index
    %c7 = arith.constant 7 : index
    %c0_49 = arith.constant 0 : index
    %c0_50 = arith.constant 0 : index
    %80 = vector.load %arg7[%c0_48, %c7, %c0_49, %c0_50] : memref<1x8x32x32xf32, #tpu.memory_space<vmem>>, vector<1x1x32x32xf32>
    %81 = vector.shape_cast %80 : vector<1x1x32x32xf32> to vector<32x32xf32>
    %82 = vector.shape_cast %79 : vector<32x32xf32> to vector<1x1x32x32xf32>
    tpu.vector_store %arg7[%c0_48, %c7, %c0_49, %c0_50], %82 {strides = array<i32>} : memref<1x8x32x32xf32, #tpu.memory_space<vmem>>, vector<1x1x32x32xf32>,
    return
  }
  func.func @transform_0(%arg0: i32) -> (i32, i32, i32, i32) {
    %c0_i32 = arith.constant 0 : i32
    %c0_i32_0 = arith.constant 0 : i32
    %c0_i32_1 = arith.constant 0 : i32
    %c0_i32_2 = arith.constant 0 : i32
    return %arg0, %c0_i32, %c0_i32_0, %c0_i32_1 : i32, i32, i32, i32
  }
  func.func @transform_1(%arg0: i32) -> (i32, i32) {
    %c0_i32 = arith.constant 0 : i32
    %c0_i32_0 = arith.constant 0 : i32
    %c0_i32_1 = arith.constant 0 : i32
    return %c0_i32, %c0_i32_0 : i32, i32
  }
  func.func @transform_2(%arg0: i32) -> (i32, i32) {
    %c0_i32 = arith.constant 0 : i32
    %c0_i32_0 = arith.constant 0 : i32
    %c0_i32_1 = arith.constant 0 : i32
    return %c0_i32, %c0_i32_0 : i32, i32
  }
  func.func @transform_3(%arg0: i32) -> (i32, i32) {
    %c0_i32 = arith.constant 0 : i32
    %c0_i32_0 = arith.constant 0 : i32
    %c0_i32_1 = arith.constant 0 : i32
    return %c0_i32, %c0_i32_0 : i32, i32
  }
  func.func @transform_4(%arg0: i32) -> (i32, i32) {
    %c0_i32 = arith.constant 0 : i32
    %c0_i32_0 = arith.constant 0 : i32
    %c0_i32_1 = arith.constant 0 : i32
    return %c0_i32, %c0_i32_0 : i32, i32
  }
  func.func @transform_5(%arg0: i32) -> (i32, i32) {
    %c0_i32 = arith.constant 0 : i32
    %c0_i32_0 = arith.constant 0 : i32
    %c0_i32_1 = arith.constant 0 : i32
    return %c0_i32, %c0_i32_0 : i32, i32
  }
  func.func @transform_6(%arg0: i32) -> (i32, i32, i32, i32) {
    %c0_i32 = arith.constant 0 : i32
    %c0_i32_0 = arith.constant 0 : i32
    %c0_i32_1 = arith.constant 0 : i32
    %c0_i32_2 = arith.constant 0 : i32
    return %arg0, %c0_i32, %c0_i32_0, %c0_i32_1 : i32, i32, i32, i32
  }
}

</mosaic_0001>

<llo_original>
// kernel: tpu_custom_call.1
$region0: #{tpu_custom_call.1}
  #allocation0 [shape = 'u32[]', space=smem, size = 0x4, offset = 0x4, fixed_abs, tag = 'smem constant byte address 0x4 - core index']
  #allocation1 [shape = 'u32[144,128]{1,0:T(1,128)}', space=vmem, size = 0x12000, scoped, tag = 'internal scratch']
  #allocation2 [shape = 'bf16[32,128]{1,0:T(16,128)(2,1)}', space=vmem, size = 0x2000, scoped, tag = 'scratch operand']
  %s0 = inlined_call_operand.hbm [shape: f32[2,4,32,32], index: 0, kind: input, shape index: {}]
  %s1 = inlined_call_operand.vmem [shape: bf16[128,32], index: 1, kind: input, shape index: {}]
  %s2 = inlined_call_operand.vmem [shape: bf16[128,128], index: 2, kind: input, shape index: {}]
  %s3 = inlined_call_operand.hbm [shape: bf16[128,128], index: 3, kind: input, shape index: {}]
  %s4 = inlined_call_operand.hbm [shape: bf16[256,256], index: 4, kind: input, shape index: {}]
  %s5 = inlined_call_operand.vmem [shape: f32[1,256], index: 5, kind: input, shape index: {}]
  %s6 = inlined_call_operand.hbm [shape: f32[2,8,32,32], index: 6, kind: output, shape index: {}]
  %s7 = sld [smem:[#allocation0]]
  $region69: #{tpu_custom_call.1} parent=0
    _
  %s9 = ssub.s32 1, %s7
  %s10 = scalar_select 0, %s9, %s7
  $region1: #{tpu_custom_call.1} parent=0
    #allocation3 [shape = 'u8[131072]{0}', space=vmem, size = 0x20000, scoped, tag = 'input window, operand 0']
    #allocation4 [shape = 's32[2]{0}', space=sflag, size = 0x8, scoped, tag = 'scoped memory for tpu_custom_call.1']
    #allocation5 [shape = 's32[2]{0}', space=sflag, size = 0x8, scoped, tag = 'scoped memory for tpu_custom_call.1']
    #allocation6 [shape = 'u8[32768]{0}', space=vmem, size = 0x8000, scoped, tag = 'input window, operand 3, single buffered']
    #allocation7 [shape = 's32[1]{0}', space=sflag, size = 0x4, scoped, tag = 'scoped memory for tpu_custom_call.1']
    #allocation8 [shape = 'u8[131072]{0}', space=vmem, size = 0x20000, scoped, tag = 'input window, operand 4, single buffered']
    #allocation9 [shape = 'u8[262144]{0}', space=vmem, size = 0x40000, scoped, tag = 'output window, operand 0']
    %11 = vsyncpa [#allocation4], 0
    %s12 = scalar_lea.sflag [#allocation4], 1
    %13 = vsyncpa %s12, 0
    %14 = vsyncpa [#allocation7], 0
    %15 = vsyncpa [#allocation5], 0
    %s16 = scalar_lea.sflag [#allocation5], 1
    %17 = vsyncpa %s16, 0
    loop: start=0, step=1, limit=4
    $region2: #{tpu_custom_call.1} parent=1 // loop_pre_header
      _
    $region3: #{tpu_custom_call.1} parent=1 // loop_header
      %s19 = sphi 0, %s23
      %p20 = scmp.ge.s32.totalorder %s19, 4
      %s29 = sphi 0, %s31
      %s32 = sphi 0, %s29
      %s33 = sphi 0, %s32
      %s49 = sphi 0, %s33
      %s53 = sphi 0, %s53
      %s55 = sphi 0, %s53
      %s56 = sphi 0, %s55
      %s70 = sphi 0, %s56
      %s74 = sphi 0, %s74
      %s76 = sphi 0, %s74
      %s77 = sphi 0, %s76
      %s91 = sphi 0, %s77
      %s95 = sphi 0, %s95
      %s97 = sphi 0, %s95
      %s98 = sphi 0, %s97
      %s112 = sphi 0, %s98
      %s116 = sphi 0, %s116
      %s118 = sphi 0, %s116
      %s119 = sphi 0, %s118
      %s133 = sphi 0, %s119
      %s137 = sphi 0, %s137
      %s139 = sphi 0, %s137
      %s140 = sphi 0, %s139
      %s154 = sphi 0, %s140
      %s160 = sphi 0, %s162
      %s163 = sphi 0, %s160
      %s164 = sphi 0, %s163
      %s180 = sphi 0, %s164
    $region4: #{tpu_custom_call.1} parent=1 // loop_header_branch
      %22 = sbr.rel (%p20) target = $region8
    $region5: #{tpu_custom_call.1} parent=1 // loop_body
      %s24 = ssub.s32 %s19, 1
      %s25 = ssub.s32 %s19, 2
      %s26 = sadd.s32 %s19, 1
      %s27 = ssub.s32 %s19, %s26
      %p28 = scmp.eq.s32.totalorder %s27, 0
      %s30 = sadd.s32 %s29, 1
      %s31 = scalar_select %p28, %s29, %s30
      %p34 = pneg %p28
      %p35 = scmp.eq.s32.totalorder %s19, 1
      %p36 = por %p34, %p35
      %p37 = scmp.ne.s32.totalorder %s29, %s32
      %p38 = scmp.eq.s32.totalorder %s19, 0
      %p39 = por %p37, %p38
      %p40 = scmp.ne.s32.totalorder %s29, %s32
      %p41 = scmp.eq.s32.totalorder %s24, 1
      %p42 = por %p40, %p41
      %p43 = scmp.ne.s32.totalorder %s32, %s33
      %p44 = scmp.eq.s32.totalorder %s24, 0
      %p45 = por %p43, %p44
      %p46 = scmp.ne.s32.totalorder %s32, %s33
      %p47 = scmp.eq.s32.totalorder %s25, 1
      %p48 = por %p46, %p47
      %p50 = scmp.ne.s32.totalorder %s33, %s49
      %p51 = scmp.eq.s32.totalorder %s25, 0
      %p52 = por %p50, %p51
      %s54 = sadd.s32 %s53, 1
      %p57 = scmp.eq.s32.totalorder %s19, 1
      %p58 = scmp.ne.s32.totalorder %s53, %s55
      %p59 = scmp.eq.s32.totalorder %s19, 0
      %p60 = por %p58, %p59
      %p61 = scmp.ne.s32.totalorder %s53, %s55
      %p62 = scmp.eq.s32.totalorder %s24, 1
      %p63 = por %p61, %p62
      %p64 = scmp.ne.s32.totalorder %s55, %s56
      %p65 = scmp.eq.s32.totalorder %s24, 0
      %p66 = por %p64, %p65
      %p67 = scmp.ne.s32.totalorder %s55, %s56
      %p68 = scmp.eq.s32.totalorder %s25, 1
      %p69 = por %p67, %p68
      %p71 = scmp.ne.s32.totalorder %s56, %s70
      %p72 = scmp.eq.s32.totalorder %s25, 0
      %p73 = por %p71, %p72
      %s75 = sadd.s32 %s74, 1
      %p78 = scmp.eq.s32.totalorder %s19, 1
      %p79 = scmp.ne.s32.totalorder %s74, %s76
      %p80 = scmp.eq.s32.totalorder %s19, 0
      %p81 = por %p79, %p80
      %p82 = scmp.ne.s32.totalorder %s74, %s76
      %p83 = scmp.eq.s32.totalorder %s24, 1
      %p84 = por %p82, %p83
      %p85 = scmp.ne.s32.totalorder %s76, %s77
      %p86 = scmp.eq.s32.totalorder %s24, 0
      %p87 = por %p85, %p86
      %p88 = scmp.ne.s32.totalorder %s76, %s77
      %p89 = scmp.eq.s32.totalorder %s25, 1
      %p90 = por %p88, %p89
      %p92 = scmp.ne.s32.totalorder %s77, %s91
      %p93 = scmp.eq.s32.totalorder %s25, 0
      %p94 = por %p92, %p93
      %s96 = sadd.s32 %s95, 1
      %p99 = scmp.eq.s32.totalorder %s19, 1
      %p100 = scmp.ne.s32.totalorder %s95, %s97
      %p101 = scmp.eq.s32.totalorder %s19, 0
      %p102 = por %p100, %p101
      %p103 = scmp.ne.s32.totalorder %s95, %s97
      %p104 = scmp.eq.s32.totalorder %s24, 1
      %p105 = por %p103, %p104
      %p106 = scmp.ne.s32.totalorder %s97, %s98
      %p107 = scmp.eq.s32.totalorder %s24, 0
      %p108 = por %p106, %p107
      %p109 = scmp.ne.s32.totalorder %s97, %s98
      %p110 = scmp.eq.s32.totalorder %s25, 1
      %p111 = por %p109, %p110
      %p113 = scmp.ne.s32.totalorder %s98, %s112
      %p114 = scmp.eq.s32.totalorder %s25, 0
      %p115 = por %p113, %p114
      %s117 = sadd.s32 %s116, 1
      %p120 = scmp.eq.s32.totalorder %s19, 1
      %p121 = scmp.ne.s32.totalorder %s116, %s118
      %p122 = scmp.eq.s32.totalorder %s19, 0
      %p123 = por %p121, %p122
      %p124 = scmp.ne.s32.totalorder %s116, %s118
      %p125 = scmp.eq.s32.totalorder %s24, 1
      %p126 = por %p124, %p125
      %p127 = scmp.ne.s32.totalorder %s118, %s119
      %p128 = scmp.eq.s32.totalorder %s24, 0
      %p129 = por %p127, %p128
      %p130 = scmp.ne.s32.totalorder %s118, %s119
      %p131 = scmp.eq.s32.totalorder %s25, 1
      %p132 = por %p130, %p131
      %p134 = scmp.ne.s32.totalorder %s119, %s133
      %p135 = scmp.eq.s32.totalorder %s25, 0
      %p136 = por %p134, %p135
      %s138 = sadd.s32 %s137, 1
      %p141 = scmp.eq.s32.totalorder %s19, 1
      %p142 = scmp.ne.s32.totalorder %s137, %s139
      %p143 = scmp.eq.s32.totalorder %s19, 0
      %p144 = por %p142, %p143
      %p145 = scmp.ne.s32.totalorder %s137, %s139
      %p146 = scmp.eq.s32.totalorder %s24, 1
      %p147 = por %p145, %p146
      %p148 = scmp.ne.s32.totalorder %s139, %s140
      %p149 = scmp.eq.s32.totalorder %s24, 0
      %p150 = por %p148, %p149
      %p151 = scmp.ne.s32.totalorder %s139, %s140
      %p152 = scmp.eq.s32.totalorder %s25, 1
      %p153 = por %p151, %p152
      %p155 = scmp.ne.s32.totalorder %s140, %s154
      %p156 = scmp.eq.s32.totalorder %s25, 0
      %p157 = por %p155, %p156
      %s158 = ssub.s32 %s19, %s26
      %p159 = scmp.eq.s32.totalorder %s158, 0
      %s161 = sadd.s32 %s160, 1
      %s162 = scalar_select %p159, %s160, %s161
      %p165 = pneg %p159
      %p166 = scmp.eq.s32.totalorder %s19, 1
      %p167 = por %p165, %p166
      %p168 = scmp.ne.s32.totalorder %s160, %s163
      %p169 = scmp.eq.s32.totalorder %s19, 0
      %p170 = por %p168, %p169
      %p171 = scmp.ne.s32.totalorder %s160, %s163
      %p172 = scmp.eq.s32.totalorder %s24, 1
      %p173 = por %p171, %p172
      %p174 = scmp.ne.s32.totalorder %s163, %s164
      %p175 = scmp.eq.s32.totalorder %s24, 0
      %p176 = por %p174, %p175
      %p177 = scmp.ne.s32.totalorder %s163, %s164
      %p178 = scmp.eq.s32.totalorder %s25, 1
      %p179 = por %p177, %p178
      %p181 = scmp.ne.s32.totalorder %s164, %s180
      %p182 = scmp.eq.s32.totalorder %s25, 0
      %p183 = por %p181, %p182
      %p184 = scmp.le.s32.totalorder 1, %s19
      %p185 = scmp.lt.s32.totalorder %s19, 3
      %p186 = pnand %p184, %p185
      %p187 = pneg %p186
      // Predicated region
      $region9: #{tpu_custom_call.1} parent=5 // pred_check
        _
      $region10: #{tpu_custom_call.1} parent=5 // pred_check_branch
        %189 = sbr.rel (%p186) target = $region12
      $region11: #{tpu_custom_call.1} parent=5 // pred_region
        %s190 = ssub.s32 %s19, 1
        // Predicated region
        $region13: #{tpu_custom_call.1} parent=11 // pred_check
          %p191 = pneg %p66
        $region14: #{tpu_custom_call.1} parent=11 // pred_check_branch
          %193 = sbr.rel (%p191) target = $region16
        $region15: #{tpu_custom_call.1} parent=11 // pred_region
          _
        $region16: #{tpu_custom_call.1} parent=11 // pred_fallthru
          _
        // Predicated region
        $region17: #{tpu_custom_call.1} parent=11 // pred_check
          %p194 = pneg %p87
        $region18: #{tpu_custom_call.1} parent=11 // pred_check_branch
          %196 = sbr.rel (%p194) target = $region20
        $region19: #{tpu_custom_call.1} parent=11 // pred_region
          _
        $region20: #{tpu_custom_call.1} parent=11 // pred_fallthru
          _
        // Predicated region
        $region21: #{tpu_custom_call.1} parent=11 // pred_check
          %p197 = pneg %p108
        $region22: #{tpu_custom_call.1} parent=11 // pred_check_branch
          %199 = sbr.rel (%p197) target = $region24
        $region23: #{tpu_custom_call.1} parent=11 // pred_region
          %s201 = ssub.s32 1024, 1024
          %202 = vsyncadd [#allocation7], %s201
          %s203 = sshll.u32 [#allocation6], 4
          %s204 = int_to_ptr.vmem [resolvable:$true] %s203
          %209 = dma.hbm_to_vmem [thread:$0]  %s3, 1024, %s204, [#allocation7], 64, 64, 4
        $region24: #{tpu_custom_call.1} parent=11 // pred_fallthru
          _
        // Predicated region
        $region25: #{tpu_custom_call.1} parent=11 // pred_check
          %p210 = pneg %p129
        $region26: #{tpu_custom_call.1} parent=11 // pred_check_branch
          %212 = sbr.rel (%p210) target = $region28
        $region27: #{tpu_custom_call.1} parent=11 // pred_region
          %s214 = ssub.s32 4096, 4096
          %215 = vsyncadd [#allocation7], %s214
          %s216 = sshll.u32 [#allocation8], 4
          %s217 = int_to_ptr.vmem [resolvable:$true] %s216
          %222 = dma.hbm_to_vmem [thread:$0]  %s4, 4096, %s217, [#allocation7], 128, 128, 8
        $region28: #{tpu_custom_call.1} parent=11 // pred_fallthru
          _
        // Predicated region
        $region29: #{tpu_custom_call.1} parent=11 // pred_check
          %p223 = pneg %p150
        $region30: #{tpu_custom_call.1} parent=11 // pred_check_branch
          %225 = sbr.rel (%p223) target = $region32
        $region31: #{tpu_custom_call.1} parent=11 // pred_region
          _
        $region32: #{tpu_custom_call.1} parent=11 // pred_fallthru
          _
      $region12: #{tpu_custom_call.1} parent=5 // pred_fallthru
        _
      %p226 = scmp.lt.s32.totalorder %s19, 2
      // Predicated region
      $region33: #{tpu_custom_call.1} parent=5 // pred_check
        %p227 = pneg %p226
      $region34: #{tpu_custom_call.1} parent=5 // pred_check_branch
        %229 = sbr.rel (%p227) target = $region36
      $region35: #{tpu_custom_call.1} parent=5 // pred_region
        // Predicated region
        $region37: #{tpu_custom_call.1} parent=35 // pred_check
          %p230 = pneg %p39
        $region38: #{tpu_custom_call.1} parent=35 // pred_check_branch
          %232 = sbr.rel (%p230) target = $region40
        $region39: #{tpu_custom_call.1} parent=35 // pred_region
          %s233 = sand.u32 %s29, 1
          %s234 = scalar_lea.sflag [#allocation4], %s233
          %s235 = sand.u32 %s29, 1
          %s236 = smul.addr %s235, 128
          %s237 = scalar_lea.vmem [#allocation3], %s236
          %s239 = ssub.s32 2048, 2048
          %240 = vsyncadd %s234, %s239
          %s241 = smul.addr %s19, 16
          %s242 = smul.addr %s241, 128
          %s243 = scalar_lea.hbm %s0, %s242
          %s244 = sshll.u32 %s237, 4
          %s245 = int_to_ptr.vmem [resolvable:$true] %s244
          %250 = dma.hbm_to_vmem [thread:$0]  %s243, 2048, %s245, %s234, 128, 128, 8
        $region40: #{tpu_custom_call.1} parent=35 // pred_fallthru
          _
      $region36: #{tpu_custom_call.1} parent=5 // pred_fallthru
        _
      %p251 = scmp.le.s32.totalorder 1, %s19
      %p252 = scmp.lt.s32.totalorder %s19, 3
      %p253 = pnand %p251, %p252
      %p254 = pneg %p253
      // Predicated region
      $region41: #{tpu_custom_call.1} parent=5 // pred_check
        _
      $region42: #{tpu_custom_call.1} parent=5 // pred_check_branch
        %256 = sbr.rel (%p253) target = $region44
      $region43: #{tpu_custom_call.1} parent=5 // pred_region
        %s257 = ssub.s32 %s19, 1
        %s258 = sand.u32 %s32, 1
        %s259 = scalar_lea.sflag [#allocation4], %s258
        %s260 = sand.u32 %s32, 1
        %s261 = smul.addr %s260, 128
        %s262 = scalar_lea.vmem [#allocation3], %s261
        // Predicated region
        $region45: #{tpu_custom_call.1} parent=43 // pred_check
          %p263 = pneg %p45
        $region46: #{tpu_custom_call.1} parent=43 // pred_check_branch
          %265 = sbr.rel (%p263) target = $region48
        $region47: #{tpu_custom_call.1} parent=43 // pred_region
          %266 = dma.done %s259, 2048
        $region48: #{tpu_custom_call.1} parent=43 // pred_fallthru
          _
        // Predicated region
        $region49: #{tpu_custom_call.1} parent=43 // pred_check
          %p267 = pneg %p108
        $region50: #{tpu_custom_call.1} parent=43 // pred_check_branch
          %269 = sbr.rel (%p267) target = $region52
        $region51: #{tpu_custom_call.1} parent=43 // pred_region
          %270 = dma.done [#allocation7], 1024
        $region52: #{tpu_custom_call.1} parent=43 // pred_fallthru
          _
        // Predicated region
        $region53: #{tpu_custom_call.1} parent=43 // pred_check
          %p271 = pneg %p129
        $region54: #{tpu_custom_call.1} parent=43 // pred_check_branch
          %273 = sbr.rel (%p271) target = $region56
        $region55: #{tpu_custom_call.1} parent=43 // pred_region
          %274 = dma.done [#allocation7], 4096
        $region56: #{tpu_custom_call.1} parent=43 // pred_fallthru
          _
        %s275 = sand.u32 %s32, 1
        %s276 = scalar_lea.sflag [#allocation4], %s275
        %s277 = sand.u32 %s32, 1
        %s278 = smul.addr %s277, 128
        %s279 = scalar_lea.vmem [#allocation3], %s278
        %p280 = pneg %p45
        %p281 = pneg %p42
        %p282 = pneg %p66
        %p283 = pneg %p63
        %p284 = pneg %p87
        %p285 = pneg %p84
        %p286 = pneg %p108
        %p287 = pneg %p105
        %p288 = pneg %p129
        %p289 = pneg %p126
        %p290 = pneg %p150
        %p291 = pneg %p147
        %p292 = pneg %p176
        %p293 = pneg %p173
        %s294 = sand.u32 %s163, 1
        %s295 = scalar_lea.sflag [#allocation5], %s294
        %s296 = sand.u32 %s163, 1
        %s297 = smul.addr %s296, 256
        %s298 = scalar_lea.vmem [#allocation9], %s297
        %v300 = vld [vmem:[%s262] sm:$0xff]
        %v301 = vld [vmem:[%s262 + $0x8] sm:$0xff]
        %v302 = vld [vmem:[%s262 + $0x10] sm:$0xff]
        %v303 = vld [vmem:[%s262 + $0x18] sm:$0xff]
        %v304 = vld [vmem:[%s262 + $0x20] sm:$0xff]
        %v305 = vld [vmem:[%s262 + $0x28] sm:$0xff]
        %v306 = vld [vmem:[%s262 + $0x30] sm:$0xff]
        %v307 = vld [vmem:[%s262 + $0x38] sm:$0xff]
        %v308 = vld [vmem:[%s262 + $0x40] sm:$0xff]
        %v309 = vld [vmem:[%s262 + $0x48] sm:$0xff]
        %v310 = vld [vmem:[%s262 + $0x50] sm:$0xff]
        %v311 = vld [vmem:[%s262 + $0x58] sm:$0xff]
        %v312 = vld [vmem:[%s262 + $0x60] sm:$0xff]
        %v313 = vld [vmem:[%s262 + $0x68] sm:$0xff]
        %v314 = vld [vmem:[%s262 + $0x70] sm:$0xff]
        %v315 = vld [vmem:[%s262 + $0x78] sm:$0xff]
        %v316 = vpack.c.bf16 %v301, %v300
        %v317 = vpack.c.bf16 %v303, %v302
        %v318 = vpack.c.bf16 %v305, %v304
        %v319 = vpack.c.bf16 %v307, %v306
        %v320 = vpack.c.bf16 %v309, %v308
        %v321 = vpack.c.bf16 %v311, %v310
        %v322 = vpack.c.bf16 %v313, %v312
        %v323 = vpack.c.bf16 %v315, %v314
        %vm324 = vcmask 261120
        %325 = vst.msk [vmem:[#allocation2] sm:$0xff] %vm324, %v316
        %326 = vst.msk [vmem:[#allocation2 + $0x8] sm:$0xff] %vm324, %v317
        %329 = vrot.lane.b32.xlu0 %v318, 32
        %v330 = vpop.permute.xlu0 %329
        %331 = vrot.lane.b32.xlu0 %v319, 32
        %v332 = vpop.permute.xlu0 %331
        %vm335 = vcmask 523520
        %336 = vst.msk [vmem:[#allocation2] sm:$0xff] %vm335, %v330
        %337 = vst.msk [vmem:[#allocation2 + $0x8] sm:$0xff] %vm335, %v332
        %340 = vrot.lane.b32.xlu0 %v320, 64
        %v341 = vpop.permute.xlu0 %340
        %342 = vrot.lane.b32.xlu0 %v321, 64
        %v343 = vpop.permute.xlu0 %342
        %vm346 = vcmask 785920
        %347 = vst.msk [vmem:[#allocation2] sm:$0xff] %vm346, %v341
        %348 = vst.msk [vmem:[#allocation2 + $0x8] sm:$0xff] %vm346, %v343
        %351 = vrot.lane.b32.xlu0 %v322, 96
        %v352 = vpop.permute.xlu0 %351
        %353 = vrot.lane.b32.xlu0 %v323, 96
        %v354 = vpop.permute.xlu0 %353
        %vm357 = vcmask 1048320
        %358 = vst.msk [vmem:[#allocation2] sm:$0xff] %vm357, %v352
        %359 = vst.msk [vmem:[#allocation2 + $0x8] sm:$0xff] %vm357, %v354
        %v360 = vld [vmem:[#allocation2] sm:$0xff]
        %v361 = vld [vmem:[#allocation2 + $0x8] sm:$0xff]
        %v362 = vld [vmem:[%s2] sm:$0xf]
        %v363 = vld [vmem:[%s2 + $0x4] sm:$0xf]
        %v364 = vld [vmem:[%s2 + $0x8] sm:$0xf]
        %v365 = vld [vmem:[%s2 + $0xc] sm:$0xf]
        %v366 = vld [vmem:[%s2 + $0x10] sm:$0xf]
        %v367 = vld [vmem:[%s2 + $0x14] sm:$0xf]
        %v368 = vld [vmem:[%s2 + $0x18] sm:$0xf]
        %v369 = vld [vmem:[%s2 + $0x1c] sm:$0xf]
        %v370 = vld [vmem:[%s2 + $0x20] sm:$0xf]
        %v371 = vld [vmem:[%s2 + $0x24] sm:$0xf]
        %v372 = vld [vmem:[%s2 + $0x28] sm:$0xf]
        %v373 = vld [vmem:[%s2 + $0x2c] sm:$0xf]
        %v374 = vld [vmem:[%s2 + $0x30] sm:$0xf]
        %v375 = vld [vmem:[%s2 + $0x34] sm:$0xf]
        %v376 = vld [vmem:[%s2 + $0x38] sm:$0xf]
        %v377 = vld [vmem:[%s2 + $0x3c] sm:$0xf]
        %v394 = vunpack.c.l.b16 %v362
        %v395 = vunpack.c.l.b16 %v363
        %v396 = vunpack.c.l.b16 %v364
        %v397 = vunpack.c.l.b16 %v365
        %v398 = vunpack.c.l.b16 %v366
        %v399 = vunpack.c.l.b16 %v367
        %v400 = vunpack.c.l.b16 %v368
        %v401 = vunpack.c.l.b16 %v369
        %v402 = vunpack.c.l.b16 %v370
        %v403 = vunpack.c.l.b16 %v371
        %v404 = vunpack.c.l.b16 %v372
        %v405 = vunpack.c.l.b16 %v373
        %v406 = vunpack.c.l.b16 %v374
        %v407 = vunpack.c.l.b16 %v375
        %v408 = vunpack.c.l.b16 %v376
        %v409 = vunpack.c.l.b16 %v377
        %v410 = vpack.c.b16 %v395, %v394
        %v411 = vpack.c.b16 %v397, %v396
        %v412 = vpack.c.b16 %v399, %v398
        %v413 = vpack.c.b16 %v401, %v400
        %v414 = vpack.c.b16 %v403, %v402
        %v415 = vpack.c.b16 %v405, %v404
        %v416 = vpack.c.b16 %v407, %v406
        %v417 = vpack.c.b16 %v409, %v408
        %426 = vmatprep.subr.bf16.mxu0 0
        %427 = vmatpush1.bf16.msra.mxu0 %v410
        %428 = vmatprep.subr.bf16.mxu0 0
        %429 = vmatpush1.bf16.msra.mxu0 %v411
        %430 = vmatprep.subr.bf16.mxu0 0
        %431 = vmatpush1.bf16.msra.mxu0 %v412
        %432 = vmatprep.subr.bf16.mxu0 0
        %433 = vmatpush1.bf16.msra.mxu0 %v413
        %434 = vmatprep.subr.bf16.mxu0 0
        %435 = vmatpush1.bf16.msra.mxu0 %v414
        %436 = vmatprep.subr.bf16.mxu0 0
        %437 = vmatpush1.bf16.msra.mxu0 %v415
        %438 = vmatprep.subr.bf16.mxu0 0
        %439 = vmatpush1.bf16.msra.mxu0 %v416
        %440 = vmatprep.subr.bf16.mxu0 0
        %441 = vmatpush1.bf16.msra.mxu0 %v417
        %442 = vmatprep.subr.bf16.mxu0 0
        %443 = vmatpush1.bf16.msra.mxu0 0
        %444 = vmatprep.subr.bf16.mxu0 0
        %445 = vmatpush1.bf16.msra.mxu0 0
        %446 = vmatprep.subr.bf16.mxu0 0
        %447 = vmatpush1.bf16.msra.mxu0 0
        %448 = vmatprep.subr.bf16.mxu0 0
        %449 = vmatpush1.bf16.msra.mxu0 0
        %450 = vmatprep.subr.bf16.mxu0 0
        %451 = vmatpush1.bf16.msra.mxu0 0
        %452 = vmatprep.subr.bf16.mxu0 0
        %453 = vmatpush1.bf16.msra.mxu0 0
        %454 = vmatprep.subr.bf16.mxu0 0
        %455 = vmatpush1.bf16.msra.mxu0 0
        %456 = vmatprep.subr.bf16.mxu0 0
        %457 = vmatpush1.bf16.msra.mxu0 0
        %458 = vmatprep.mubr.bf16.mxu0 0
        %459 = vmatmul.mubr.bf16.gmra.mrb[0].mxu0 %v360
        %v460 = vpop.f32.mrb[0].mxu0
        %v461 = vadd.f32 0.0, %v460
        %v462 = vpop.f32.mrb[0].mxu0
        %v463 = vpop.f32.mrb[0].mxu0
        %v464 = vadd.f32 0.0, %v463
        %v465 = vpop.f32.mrb[0].mxu0
        %466 = vmatprep.mubr.bf16.mxu0 0
        %467 = vmatmul.mubr.bf16.gmra.mrb[0].mxu0 %v361
        %v468 = vpop.f32.mrb[0].mxu0
        %v469 = vadd.f32 0.0, %v468
        %v470 = vpop.f32.mrb[0].mxu0
        %v471 = vpop.f32.mrb[0].mxu0
        %v472 = vadd.f32 0.0, %v471
        %v473 = vpop.f32.mrb[0].mxu0
        %474 = vdwg.mxu0
        %v475 = vld [vmem:[%s1] sm:$0xf]
        %v476 = vld [vmem:[%s1 + $0x4] sm:$0xf]
        %v477 = vld [vmem:[%s1 + $0x8] sm:$0xf]
        %v478 = vld [vmem:[%s1 + $0xc] sm:$0xf]
        %v479 = vld [vmem:[%s1 + $0x10] sm:$0xf]
        %v480 = vld [vmem:[%s1 + $0x14] sm:$0xf]
        %v481 = vld [vmem:[%s1 + $0x18] sm:$0xf]
        %v482 = vld [vmem:[%s1 + $0x1c] sm:$0xf]
        %v483 = vld [vmem:[%s1 + $0x20] sm:$0xf]
        %v484 = vld [vmem:[%s1 + $0x24] sm:$0xf]
        %v485 = vld [vmem:[%s1 + $0x28] sm:$0xf]
        %v486 = vld [vmem:[%s1 + $0x2c] sm:$0xf]
        %v487 = vld [vmem:[%s1 + $0x30] sm:$0xf]
        %v488 = vld [vmem:[%s1 + $0x34] sm:$0xf]
        %v489 = vld [vmem:[%s1 + $0x38] sm:$0xf]
        %v490 = vld [vmem:[%s1 + $0x3c] sm:$0xf]
        %v491 = vpack.c.bf16 %v464, %v461
        %v492 = vpack.c.bf16 %v472, %v469
        %v509 = vunpack.c.l.b16 %v475
        %v510 = vunpack.c.l.b16 %v476
        %v511 = vunpack.c.l.b16 %v477
        %v512 = vunpack.c.l.b16 %v478
        %v513 = vunpack.c.l.b16 %v479
        %v514 = vunpack.c.l.b16 %v480
        %v515 = vunpack.c.l.b16 %v481
        %v516 = vunpack.c.l.b16 %v482
        %v517 = vunpack.c.l.b16 %v483
        %v518 = vunpack.c.l.b16 %v484
        %v519 = vunpack.c.l.b16 %v485
        %v520 = vunpack.c.l.b16 %v486
        %v521 = vunpack.c.l.b16 %v487
        %v522 = vunpack.c.l.b16 %v488
        %v523 = vunpack.c.l.b16 %v489
        %v524 = vunpack.c.l.b16 %v490
        %v525 = vpack.c.b16 %v510, %v509
        %v526 = vpack.c.b16 %v512, %v511
        %v527 = vpack.c.b16 %v514, %v513
        %v528 = vpack.c.b16 %v516, %v515
        %v529 = vpack.c.b16 %v518, %v517
        %v530 = vpack.c.b16 %v520, %v519
        %v531 = vpack.c.b16 %v522, %v521
        %v532 = vpack.c.b16 %v524, %v523
        %v534 = vsel %vm324, %v525, 0
        %v537 = vsel %vm324, %v526, 0
        %v540 = vsel %vm324, %v527, 0
        %v543 = vsel %vm324, %v528, 0
        %v546 = vsel %vm324, %v529, 0
        %v549 = vsel %vm324, %v530, 0
        %v552 = vsel %vm324, %v531, 0
        %v555 = vsel %vm324, %v532, 0
        %557 = vmatprep.subr.bf16.mxu0 0
        %558 = vmatpush1.bf16.msra.mxu0 %v491
        %559 = vmatprep.subr.bf16.mxu0 0
        %560 = vmatpush1.bf16.msra.mxu0 %v492
        %561 = vmatprep.subr.bf16.mxu0 0
        %562 = vmatpush1.bf16.msra.mxu0 0
        %563 = vmatprep.subr.bf16.mxu0 0
        %564 = vmatpush1.bf16.msra.mxu0 0
        %565 = vmatprep.subr.bf16.mxu0 0
        %566 = vmatpush1.bf16.msra.mxu0 0
        %567 = vmatprep.subr.bf16.mxu0 0
        %568 = vmatpush1.bf16.msra.mxu0 0
        %569 = vmatprep.subr.bf16.mxu0 0
        %570 = vmatpush1.bf16.msra.mxu0 0
        %571 = vmatprep.subr.bf16.mxu0 0
        %572 = vmatpush1.bf16.msra.mxu0 0
        %573 = vmatprep.subr.bf16.mxu0 0
        %574 = vmatpush1.bf16.msra.mxu0 0
        %575 = vmatprep.subr.bf16.mxu0 0
        %576 = vmatpush1.bf16.msra.mxu0 0
        %577 = vmatprep.subr.bf16.mxu0 0
        %578 = vmatpush1.bf16.msra.mxu0 0
        %579 = vmatprep.subr.bf16.mxu0 0
        %580 = vmatpush1.bf16.msra.mxu0 0
        %581 = vmatprep.subr.bf16.mxu0 0
        %582 = vmatpush1.bf16.msra.mxu0 0
        %583 = vmatprep.subr.bf16.mxu0 0
        %584 = vmatpush1.bf16.msra.mxu0 0
        %585 = vmatprep.subr.bf16.mxu0 0
        %586 = vmatpush1.bf16.msra.mxu0 0
        %587 = vmatprep.subr.bf16.mxu0 0
        %588 = vmatpush1.bf16.msra.mxu0 0
        %589 = vmatprep.mubr.bf16.mxu0 0
        %590 = vmatmul.mubr.bf16.gmra.mrb[0].mxu0 %v534
        %v591 = vpop.f32.mrb[0].mxu0
        %v592 = vadd.f32 0.0, %v591
        %v593 = vpop.f32.mrb[0].mxu0
        %v594 = vpop.f32.mrb[0].mxu0
        %v595 = vadd.f32 0.0, %v594
        %v596 = vpop.f32.mrb[0].mxu0
        %597 = vmatprep.mubr.bf16.mxu0 0
        %598 = vmatmul.mubr.bf16.gmra.mrb[0].mxu0 %v537
        %v599 = vpop.f32.mrb[0].mxu0
        %v600 = vadd.f32 0.0, %v599
        %v601 = vpop.f32.mrb[0].mxu0
        %v602 = vpop.f32.mrb[0].mxu0
        %v603 = vadd.f32 0.0, %v602
        %v604 = vpop.f32.mrb[0].mxu0
        %605 = vmatprep.mubr.bf16.mxu0 0
        %606 = vmatmul.mubr.bf16.gmra.mrb[0].mxu0 %v540
        %v607 = vpop.f32.mrb[0].mxu0
        %v608 = vadd.f32 0.0, %v607
        %v609 = vpop.f32.mrb[0].mxu0
        %v610 = vpop.f32.mrb[0].mxu0
        %v611 = vadd.f32 0.0, %v610
        %v612 = vpop.f32.mrb[0].mxu0
        %613 = vmatprep.mubr.bf16.mxu0 0
        %614 = vmatmul.mubr.bf16.gmra.mrb[0].mxu0 %v543
        %v615 = vpop.f32.mrb[0].mxu0
        %v616 = vadd.f32 0.0, %v615
        %v617 = vpop.f32.mrb[0].mxu0
        %v618 = vpop.f32.mrb[0].mxu0
        %v619 = vadd.f32 0.0, %v618
        %v620 = vpop.f32.mrb[0].mxu0
        %621 = vmatprep.mubr.bf16.mxu0 0
        %622 = vmatmul.mubr.bf16.gmra.mrb[0].mxu0 %v546
        %v623 = vpop.f32.mrb[0].mxu0
        %v624 = vadd.f32 0.0, %v623
        %v625 = vpop.f32.mrb[0].mxu0
        %v626 = vpop.f32.mrb[0].mxu0
        %v627 = vadd.f32 0.0, %v626
        %v628 = vpop.f32.mrb[0].mxu0
        %629 = vmatprep.mubr.bf16.mxu0 0
        %630 = vmatmul.mubr.bf16.gmra.mrb[0].mxu0 %v549
        %v631 = vpop.f32.mrb[0].mxu0
        %v632 = vadd.f32 0.0, %v631
        %v633 = vpop.f32.mrb[0].mxu0
        %v634 = vpop.f32.mrb[0].mxu0
        %v635 = vadd.f32 0.0, %v634
        %v636 = vpop.f32.mrb[0].mxu0
        %637 = vmatprep.mubr.bf16.mxu0 0
        %638 = vmatmul.mubr.bf16.gmra.mrb[0].mxu0 %v552
        %v639 = vpop.f32.mrb[0].mxu0
        %v640 = vadd.f32 0.0, %v639
        %v641 = vpop.f32.mrb[0].mxu0
        %v642 = vpop.f32.mrb[0].mxu0
        %v643 = vadd.f32 0.0, %v642
        %v644 = vpop.f32.mrb[0].mxu0
        %645 = vmatprep.mubr.bf16.mxu0 0
        %646 = vmatmul.mubr.bf16.gmra.mrb[0].mxu0 %v555
        %v647 = vpop.f32.mrb[0].mxu0
        %v648 = vadd.f32 0.0, %v647
        %v649 = vpop.f32.mrb[0].mxu0
        %v650 = vpop.f32.mrb[0].mxu0
        %v651 = vadd.f32 0.0, %v650
        %v652 = vpop.f32.mrb[0].mxu0
        %653 = vdwg.mxu0
        %v654 = vld [vmem:[#allocation6] sm:$0xf]
        %v655 = vld [vmem:[#allocation6 + $0x4] sm:$0xf]
        %v656 = vld [vmem:[#allocation6 + $0x8] sm:$0xf]
        %v657 = vld [vmem:[#allocation6 + $0xc] sm:$0xf]
        %v658 = vld [vmem:[#allocation6 + $0x10] sm:$0xf]
        %v659 = vld [vmem:[#allocation6 + $0x14] sm:$0xf]
        %v660 = vld [vmem:[#allocation6 + $0x18] sm:$0xf]
        %v661 = vld [vmem:[#allocation6 + $0x1c] sm:$0xf]
        %v662 = vld [vmem:[#allocation6 + $0x20] sm:$0xf]
        %v663 = vld [vmem:[#allocation6 + $0x24] sm:$0xf]
        %v664 = vld [vmem:[#allocation6 + $0x28] sm:$0xf]
        %v665 = vld [vmem:[#allocation6 + $0x2c] sm:$0xf]
        %v666 = vld [vmem:[#allocation6 + $0x30] sm:$0xf]
        %v667 = vld [vmem:[#allocation6 + $0x34] sm:$0xf]
        %v668 = vld [vmem:[#allocation6 + $0x38] sm:$0xf]
        %v669 = vld [vmem:[#allocation6 + $0x3c] sm:$0xf]
        %v670 = vunpack.c.l.bf16 %v654
        %v671 = vunpack.c.l.bf16 %v655
        %v672 = vunpack.c.l.bf16 %v656
        %v673 = vunpack.c.l.bf16 %v657
        %v674 = vunpack.c.l.bf16 %v658
        %v675 = vunpack.c.l.bf16 %v659
        %v676 = vunpack.c.l.bf16 %v660
        %v677 = vunpack.c.l.bf16 %v661
        %v678 = vunpack.c.l.bf16 %v662
        %v679 = vunpack.c.l.bf16 %v663
        %v680 = vunpack.c.l.bf16 %v664
        %v681 = vunpack.c.l.bf16 %v665
        %v682 = vunpack.c.l.bf16 %v666
        %v683 = vunpack.c.l.bf16 %v667
        %v684 = vunpack.c.l.bf16 %v668
        %v685 = vunpack.c.l.bf16 %v669
        %v686 = vmul.f32 %v592, %v670
        %v687 = vmul.f32 %v595, %v671
        %v688 = vmul.f32 %v600, %v672
        %v689 = vmul.f32 %v603, %v673
        %v690 = vmul.f32 %v608, %v674
        %v691 = vmul.f32 %v611, %v675
        %v692 = vmul.f32 %v616, %v676
        %v693 = vmul.f32 %v619, %v677
        %v694 = vmul.f32 %v624, %v678
        %v695 = vmul.f32 %v627, %v679
        %v696 = vmul.f32 %v632, %v680
        %v697 = vmul.f32 %v635, %v681
        %v698 = vmul.f32 %v640, %v682
        %v699 = vmul.f32 %v643, %v683
        %v700 = vmul.f32 %v648, %v684
        %v701 = vmul.f32 %v651, %v685
        %v702 = vadd.f32 %v686, %v690
        %v703 = vadd.f32 %v687, %v691
        %v704 = vadd.f32 %v688, %v692
        %v705 = vadd.f32 %v689, %v693
        %v706 = vadd.f32 %v702, %v694
        %v707 = vadd.f32 %v703, %v695
        %v708 = vadd.f32 %v704, %v696
        %v709 = vadd.f32 %v705, %v697
        %v710 = vadd.f32 %v706, %v698
        %v711 = vadd.f32 %v707, %v699
        %v712 = vadd.f32 %v708, %v700
        %v713 = vadd.f32 %v709, %v701
        %vm714 = vcmp.gt.f32.partialorder %v710, 0.0
        %vm715 = vcmp.gt.f32.partialorder %v711, 0.0
        %vm716 = vcmp.gt.f32.partialorder %v712, 0.0
        %vm717 = vcmp.gt.f32.partialorder %v713, 0.0
        %v718 = vmul.f32 %v710, 0.2
        %v719 = vmul.f32 %v711, 0.2
        %v720 = vmul.f32 %v712, 0.2
        %v721 = vmul.f32 %v713, 0.2
        %v722 = vsel %vm714, %v710, %v718
        %v723 = vsel %vm715, %v711, %v719
        %v724 = vsel %vm716, %v712, %v720
        %v725 = vsel %vm717, %v713, %v721
        %v726 = vpack.c.bf16 %v723, %v722
        %v727 = vpack.c.bf16 %v725, %v724
        %v728 = vld [vmem:[#allocation8] sm:$0xff]
        %v729 = vld [vmem:[#allocation8 + $0x8] sm:$0xff]
        %v730 = vld [vmem:[#allocation8 + $0x10] sm:$0xff]
        %v731 = vld [vmem:[#allocation8 + $0x18] sm:$0xff]
        %v732 = vld [vmem:[#allocation8 + $0x20] sm:$0xff]
        %v733 = vld [vmem:[#allocation8 + $0x28] sm:$0xff]
        %v734 = vld [vmem:[#allocation8 + $0x30] sm:$0xff]
        %v735 = vld [vmem:[#allocation8 + $0x38] sm:$0xff]
        %v736 = vld [vmem:[#allocation8 + $0x40] sm:$0xff]
        %v737 = vld [vmem:[#allocation8 + $0x48] sm:$0xff]
        %v738 = vld [vmem:[#allocation8 + $0x50] sm:$0xff]
        %v739 = vld [vmem:[#allocation8 + $0x58] sm:$0xff]
        %v740 = vld [vmem:[#allocation8 + $0x60] sm:$0xff]
        %v741 = vld [vmem:[#allocation8 + $0x68] sm:$0xff]
        %v742 = vld [vmem:[#allocation8 + $0x70] sm:$0xff]
        %v743 = vld [vmem:[#allocation8 + $0x78] sm:$0xff]
        %v744 = vld [vmem:[#allocation8 + $0x80] sm:$0xff]
        %v745 = vld [vmem:[#allocation8 + $0x88] sm:$0xff]
        %v746 = vld [vmem:[#allocation8 + $0x90] sm:$0xff]
        %v747 = vld [vmem:[#allocation8 + $0x98] sm:$0xff]
        %v748 = vld [vmem:[#allocation8 + $0xa0] sm:$0xff]
        %v749 = vld [vmem:[#allocation8 + $0xa8] sm:$0xff]
        %v750 = vld [vmem:[#allocation8 + $0xb0] sm:$0xff]
        %v751 = vld [vmem:[#allocation8 + $0xb8] sm:$0xff]
        %v752 = vld [vmem:[#allocation8 + $0xc0] sm:$0xff]
        %v753 = vld [vmem:[#allocation8 + $0xc8] sm:$0xff]
        %v754 = vld [vmem:[#allocation8 + $0xd0] sm:$0xff]
        %v755 = vld [vmem:[#allocation8 + $0xd8] sm:$0xff]
        %v756 = vld [vmem:[#allocation8 + $0xe0] sm:$0xff]
        %v757 = vld [vmem:[#allocation8 + $0xe8] sm:$0xff]
        %v758 = vld [vmem:[#allocation8 + $0xf0] sm:$0xff]
        %v759 = vld [vmem:[#allocation8 + $0xf8] sm:$0xff]
        %v760 = vld [vmem:[%s5] sm:$0x3]
        %v762 = vlaneseq
        %v763 = vshrl.u32 %v762, 7
        %v764 = vsub.s32 0, %v763
        %v765 = vrot.slane %v760, %v764
        %v766 = vlaneseq
        %v767 = vshrl.u32 %v766, 7
        %v768 = vsub.s32 1, %v767
        %v769 = vrot.slane %v760, %v768
        %v804 = vunpack.c.l.b16 %v728
        %v805 = vunpack.c.h.b16 %v728
        %v806 = vunpack.c.l.b16 %v729
        %v807 = vunpack.c.h.b16 %v729
        %v808 = vunpack.c.l.b16 %v730
        %v809 = vunpack.c.h.b16 %v730
        %v810 = vunpack.c.l.b16 %v731
        %v811 = vunpack.c.h.b16 %v731
        %v812 = vunpack.c.l.b16 %v732
        %v813 = vunpack.c.h.b16 %v732
        %v814 = vunpack.c.l.b16 %v733
        %v815 = vunpack.c.h.b16 %v733
        %v816 = vunpack.c.l.b16 %v734
        %v817 = vunpack.c.h.b16 %v734
        %v818 = vunpack.c.l.b16 %v735
        %v819 = vunpack.c.h.b16 %v735
        %v820 = vunpack.c.l.b16 %v736
        %v821 = vunpack.c.h.b16 %v736
        %v822 = vunpack.c.l.b16 %v737
        %v823 = vunpack.c.h.b16 %v737
        %v824 = vunpack.c.l.b16 %v738
        %v825 = vunpack.c.h.b16 %v738
        %v826 = vunpack.c.l.b16 %v739
        %v827 = vunpack.c.h.b16 %v739
        %v828 = vunpack.c.l.b16 %v740
        %v829 = vunpack.c.h.b16 %v740
        %v830 = vunpack.c.l.b16 %v741
        %v831 = vunpack.c.h.b16 %v741
        %v832 = vunpack.c.l.b16 %v742
        %v833 = vunpack.c.h.b16 %v742
        %v834 = vunpack.c.l.b16 %v743
        %v835 = vunpack.c.h.b16 %v743
        %v836 = vunpack.c.l.b16 %v744
        %v837 = vunpack.c.h.b16 %v744
        %v838 = vunpack.c.l.b16 %v745
        %v839 = vunpack.c.h.b16 %v745
        %v840 = vunpack.c.l.b16 %v746
        %v841 = vunpack.c.h.b16 %v746
        %v842 = vunpack.c.l.b16 %v747
        %v843 = vunpack.c.h.b16 %v747
        %v844 = vunpack.c.l.b16 %v748
        %v845 = vunpack.c.h.b16 %v748
        %v846 = vunpack.c.l.b16 %v749
        %v847 = vunpack.c.h.b16 %v749
        %v848 = vunpack.c.l.b16 %v750
        %v849 = vunpack.c.h.b16 %v750
        %v850 = vunpack.c.l.b16 %v751
        %v851 = vunpack.c.h.b16 %v751
        %v852 = vunpack.c.l.b16 %v752
        %v853 = vunpack.c.h.b16 %v752
        %v854 = vunpack.c.l.b16 %v753
        %v855 = vunpack.c.h.b16 %v753
        %v856 = vunpack.c.l.b16 %v754
        %v857 = vunpack.c.h.b16 %v754
        %v858 = vunpack.c.l.b16 %v755
        %v859 = vunpack.c.h.b16 %v755
        %v860 = vunpack.c.l.b16 %v756
        %v861 = vunpack.c.h.b16 %v756
        %v862 = vunpack.c.l.b16 %v757
        %v863 = vunpack.c.h.b16 %v757
        %v864 = vunpack.c.l.b16 %v758
        %v865 = vunpack.c.h.b16 %v758
        %v866 = vunpack.c.l.b16 %v759
        %v867 = vunpack.c.h.b16 %v759
        %v868 = vpack.c.b16 %v806, %v804
        %v869 = vpack.c.b16 %v807, %v805
        %v870 = vpack.c.b16 %v810, %v808
        %v871 = vpack.c.b16 %v811, %v809
        %v872 = vpack.c.b16 %v814, %v812
        %v873 = vpack.c.b16 %v815, %v813
        %v874 = vpack.c.b16 %v818, %v816
        %v875 = vpack.c.b16 %v819, %v817
        %v876 = vpack.c.b16 %v822, %v820
        %v877 = vpack.c.b16 %v823, %v821
        %v878 = vpack.c.b16 %v826, %v824
        %v879 = vpack.c.b16 %v827, %v825
        %v880 = vpack.c.b16 %v830, %v828
        %v881 = vpack.c.b16 %v831, %v829
        %v882 = vpack.c.b16 %v834, %v832
        %v883 = vpack.c.b16 %v835, %v833
        %v884 = vpack.c.b16 %v838, %v836
        %v885 = vpack.c.b16 %v839, %v837
        %v886 = vpack.c.b16 %v842, %v840
        %v887 = vpack.c.b16 %v843, %v841
        %v888 = vpack.c.b16 %v846, %v844
        %v889 = vpack.c.b16 %v847, %v845
        %v890 = vpack.c.b16 %v850, %v848
        %v891 = vpack.c.b16 %v851, %v849
        %v892 = vpack.c.b16 %v854, %v852
        %v893 = vpack.c.b16 %v855, %v853
        %v894 = vpack.c.b16 %v858, %v856
        %v895 = vpack.c.b16 %v859, %v857
        %v896 = vpack.c.b16 %v862, %v860
        %v897 = vpack.c.b16 %v863, %v861
        %v898 = vpack.c.b16 %v866, %v864
        %v899 = vpack.c.b16 %v867, %v865
        %932 = vmatprep.subr.bf16.mxu0 %v869
        %933 = vmatpush1.bf16.msra.mxu0 %v868
        %934 = vmatprep.subr.bf16.mxu0 %v871
        %935 = vmatpush1.bf16.msra.mxu0 %v870
        %936 = vmatprep.subr.bf16.mxu0 %v873
        %937 = vmatpush1.bf16.msra.mxu0 %v872
        %938 = vmatprep.subr.bf16.mxu0 %v875
        %939 = vmatpush1.bf16.msra.mxu0 %v874
        %940 = vmatprep.subr.bf16.mxu0 %v877
        %941 = vmatpush1.bf16.msra.mxu0 %v876
        %942 = vmatprep.subr.bf16.mxu0 %v879
        %943 = vmatpush1.bf16.msra.mxu0 %v878
        %944 = vmatprep.subr.bf16.mxu0 %v881
        %945 = vmatpush1.bf16.msra.mxu0 %v880
        %946 = vmatprep.subr.bf16.mxu0 %v883
        %947 = vmatpush1.bf16.msra.mxu0 %v882
        %948 = vmatprep.subr.bf16.mxu0 %v885
        %949 = vmatpush1.bf16.msra.mxu0 %v884
        %950 = vmatprep.subr.bf16.mxu0 %v887
        %951 = vmatpush1.bf16.msra.mxu0 %v886
        %952 = vmatprep.subr.bf16.mxu0 %v889
        %953 = vmatpush1.bf16.msra.mxu0 %v888
        %954 = vmatprep.subr.bf16.mxu0 %v891
        %955 = vmatpush1.bf16.msra.mxu0 %v890
        %956 = vmatprep.subr.bf16.mxu0 %v893
        %957 = vmatpush1.bf16.msra.mxu0 %v892
        %958 = vmatprep.subr.bf16.mxu0 %v895
        %959 = vmatpush1.bf16.msra.mxu0 %v894
        %960 = vmatprep.subr.bf16.mxu0 %v897
        %961 = vmatpush1.bf16.msra.mxu0 %v896
        %962 = vmatprep.subr.bf16.mxu0 %v899
        %963 = vmatpush1.bf16.msra.mxu0 %v898
        %964 = vmatprep.mubr.bf16.mxu0 %v360
        %965 = vmatmul.mubr.bf16.gmra.mrb[0].mxu0 %v726
        %v966 = vpop.f32.mrb[0].mxu0
        %v967 = vadd.f32 %v765, %v966
        %v968 = vpop.f32.mrb[0].mxu0
        %v969 = vadd.f32 %v769, %v968
        %v970 = vpop.f32.mrb[0].mxu0
        %v971 = vadd.f32 %v765, %v970
        %v972 = vpop.f32.mrb[0].mxu0
        %v973 = vadd.f32 %v769, %v972
        %974 = vmatprep.mubr.bf16.mxu0 %v361
        %975 = vmatmul.mubr.bf16.gmra.mrb[0].mxu0 %v727
        %v976 = vpop.f32.mrb[0].mxu0
        %v977 = vadd.f32 %v765, %v976
        %v978 = vpop.f32.mrb[0].mxu0
        %v979 = vadd.f32 %v769, %v978
        %v980 = vpop.f32.mrb[0].mxu0
        %v981 = vadd.f32 %v765, %v980
        %v982 = vpop.f32.mrb[0].mxu0
        %v983 = vadd.f32 %v769, %v982
        %984 = vdwg.mxu0
        %vm985 = vcmp.gt.f32.partialorder %v967, 0.0
        %vm986 = vcmp.gt.f32.partialorder %v969, 0.0
        %vm987 = vcmp.gt.f32.partialorder %v971, 0.0
        %vm988 = vcmp.gt.f32.partialorder %v973, 0.0
        %vm989 = vcmp.gt.f32.partialorder %v977, 0.0
        %vm990 = vcmp.gt.f32.partialorder %v979, 0.0
        %vm991 = vcmp.gt.f32.partialorder %v981, 0.0
        %vm992 = vcmp.gt.f32.partialorder %v983, 0.0
        %v993 = vmul.f32 %v967, 0.2
        %v994 = vmul.f32 %v969, 0.2
        %v995 = vmul.f32 %v971, 0.2
        %v996 = vmul.f32 %v973, 0.2
        %v997 = vmul.f32 %v977, 0.2
        %v998 = vmul.f32 %v979, 0.2
        %v999 = vmul.f32 %v981, 0.2
        %v1000 = vmul.f32 %v983, 0.2
        %v1001 = vsel %vm985, %v967, %v993
        %v1002 = vsel %vm986, %v969, %v994
        %v1003 = vsel %vm987, %v971, %v995
        %v1004 = vsel %vm988, %v973, %v996
        %v1005 = vsel %vm989, %v977, %v997
        %v1006 = vsel %vm990, %v979, %v998
        %v1007 = vsel %vm991, %v981, %v999
        %v1008 = vsel %vm992, %v983, %v1000
        %1009 = vst.msk [vmem:[%s298] sm:$0xff] %vm324, %v1001
        %1010 = vst.msk [vmem:[%s298 + $0x8] sm:$0xff] %vm324, %v1003
        %1011 = vst.msk [vmem:[%s298 + $0x10] sm:$0xff] %vm324, %v1005
        %1012 = vst.msk [vmem:[%s298 + $0x18] sm:$0xff] %vm324, %v1007
        %1017 = vrot.lane.b32.xlu0 %v1001, 96
        %v1018 = vpop.permute.xlu0 %1017
        %1019 = vrot.lane.b32.xlu0 %v1003, 96
        %v1020 = vpop.permute.xlu0 %1019
        %1021 = vrot.lane.b32.xlu0 %v1005, 96
        %v1022 = vpop.permute.xlu0 %1021
        %1023 = vrot.lane.b32.xlu0 %v1007, 96
        %v1024 = vpop.permute.xlu0 %1023
        %s1029 = scalar_lea.vmem %s298, 32 [#allocation9]
        %1030 = vst.msk [vmem:[%s1029] sm:$0xff] %vm324, %v1018
        %1031 = vst.msk [vmem:[%s1029 + $0x8] sm:$0xff] %vm324, %v1020
        %1032 = vst.msk [vmem:[%s1029 + $0x10] sm:$0xff] %vm324, %v1022
        %1033 = vst.msk [vmem:[%s1029 + $0x18] sm:$0xff] %vm324, %v1024
        %1034 = vrot.lane.b32.xlu0 %v1001, 64
        %v1035 = vpop.permute.xlu0 %1034
        %1036 = vrot.lane.b32.xlu0 %v1003, 64
        %v1037 = vpop.permute.xlu0 %1036
        %1038 = vrot.lane.b32.xlu0 %v1005, 64
        %v1039 = vpop.permute.xlu0 %1038
        %1040 = vrot.lane.b32.xlu0 %v1007, 64
        %v1041 = vpop.permute.xlu0 %1040
        %s1046 = scalar_lea.vmem %s298, 64 [#allocation9]
        %1047 = vst.msk [vmem:[%s1046] sm:$0xff] %vm324, %v1035
        %1048 = vst.msk [vmem:[%s1046 + $0x8] sm:$0xff] %vm324, %v1037
        %1049 = vst.msk [vmem:[%s1046 + $0x10] sm:$0xff] %vm324, %v1039
        %1050 = vst.msk [vmem:[%s1046 + $0x18] sm:$0xff] %vm324, %v1041
        %1051 = vrot.lane.b32.xlu0 %v1001, 32
        %v1052 = vpop.permute.xlu0 %1051
        %1053 = vrot.lane.b32.xlu0 %v1003, 32
        %v1054 = vpop.permute.xlu0 %1053
        %1055 = vrot.lane.b32.xlu0 %v1005, 32
        %v1056 = vpop.permute.xlu0 %1055
        %1057 = vrot.lane.b32.xlu0 %v1007, 32
        %v1058 = vpop.permute.xlu0 %1057
        %s1063 = scalar_lea.vmem %s298, 96 [#allocation9]
        %1064 = vst.msk [vmem:[%s1063] sm:$0xff] %vm324, %v1052
        %1065 = vst.msk [vmem:[%s1063 + $0x8] sm:$0xff] %vm324, %v1054
        %1066 = vst.msk [vmem:[%s1063 + $0x10] sm:$0xff] %vm324, %v1056
        %1067 = vst.msk [vmem:[%s1063 + $0x18] sm:$0xff] %vm324, %v1058
        %s1068 = scalar_lea.vmem %s298, 128 [#allocation9]
        %1069 = vst.msk [vmem:[%s1068] sm:$0xff] %vm324, %v1002
        %1070 = vst.msk [vmem:[%s1068 + $0x8] sm:$0xff] %vm324, %v1004
        %1071 = vst.msk [vmem:[%s1068 + $0x10] sm:$0xff] %vm324, %v1006
        %1072 = vst.msk [vmem:[%s1068 + $0x18] sm:$0xff] %vm324, %v1008
        %1077 = vrot.lane.b32.xlu0 %v1002, 96
        %v1078 = vpop.permute.xlu0 %1077
        %1079 = vrot.lane.b32.xlu0 %v1004, 96
        %v1080 = vpop.permute.xlu0 %1079
        %1081 = vrot.lane.b32.xlu0 %v1006, 96
        %v1082 = vpop.permute.xlu0 %1081
        %1083 = vrot.lane.b32.xlu0 %v1008, 96
        %v1084 = vpop.permute.xlu0 %1083
        %s1089 = scalar_lea.vmem %s298, 160 [#allocation9]
        %1090 = vst.msk [vmem:[%s1089] sm:$0xff] %vm324, %v1078
        %1091 = vst.msk [vmem:[%s1089 + $0x8] sm:$0xff] %vm324, %v1080
        %1092 = vst.msk [vmem:[%s1089 + $0x10] sm:$0xff] %vm324, %v1082
        %1093 = vst.msk [vmem:[%s1089 + $0x18] sm:$0xff] %vm324, %v1084
        %1094 = vrot.lane.b32.xlu0 %v1002, 64
        %v1095 = vpop.permute.xlu0 %1094
        %1096 = vrot.lane.b32.xlu0 %v1004, 64
        %v1097 = vpop.permute.xlu0 %1096
        %1098 = vrot.lane.b32.xlu0 %v1006, 64
        %v1099 = vpop.permute.xlu0 %1098
        %1100 = vrot.lane.b32.xlu0 %v1008, 64
        %v1101 = vpop.permute.xlu0 %1100
        %s1106 = scalar_lea.vmem %s298, 192 [#allocation9]
        %1107 = vst.msk [vmem:[%s1106] sm:$0xff] %vm324, %v1095
        %1108 = vst.msk [vmem:[%s1106 + $0x8] sm:$0xff] %vm324, %v1097
        %1109 = vst.msk [vmem:[%s1106 + $0x10] sm:$0xff] %vm324, %v1099
        %1110 = vst.msk [vmem:[%s1106 + $0x18] sm:$0xff] %vm324, %v1101
        %1111 = vrot.lane.b32.xlu0 %v1002, 32
        %v1112 = vpop.permute.xlu0 %1111
        %1113 = vrot.lane.b32.xlu0 %v1004, 32
        %v1114 = vpop.permute.xlu0 %1113
        %1115 = vrot.lane.b32.xlu0 %v1006, 32
        %v1116 = vpop.permute.xlu0 %1115
        %1117 = vrot.lane.b32.xlu0 %v1008, 32
        %v1118 = vpop.permute.xlu0 %1117
        %s1123 = scalar_lea.vmem %s298, 224 [#allocation9]
        %1124 = vst.msk [vmem:[%s1123] sm:$0xff] %vm324, %v1112
        %1125 = vst.msk [vmem:[%s1123 + $0x8] sm:$0xff] %vm324, %v1114
        %1126 = vst.msk [vmem:[%s1123 + $0x10] sm:$0xff] %vm324, %v1116
        %1127 = vst.msk [vmem:[%s1123 + $0x18] sm:$0xff] %vm324, %v1118
        %s1128 = sand.u32 %s163, 1
        %s1129 = scalar_lea.sflag [#allocation5], %s1128
        %s1130 = sand.u32 %s163, 1
        %s1131 = smul.addr %s1130, 256
        %s1132 = scalar_lea.vmem [#allocation9], %s1131
        // Predicated region
        $region57: #{tpu_custom_call.1} parent=43 // pred_check
          %p1133 = pneg %p173
        $region58: #{tpu_custom_call.1} parent=43 // pred_check_branch
          %1135 = sbr.rel (%p1133) target = $region60
        $region59: #{tpu_custom_call.1} parent=43 // pred_region
          %s1137 = ssub.s32 4096, 4096
          %1138 = vsyncadd %s1129, %s1137
          %s1139 = smul.addr %s24, 32
          %s1140 = smul.addr %s1139, 128
          %s1141 = scalar_lea.hbm %s6, %s1140
          %s1142 = sshll.u32 %s1132, 4
          %s1143 = int_to_ptr.vmem [resolvable:$true] %s1142
          %1148 = dma.vmem_to_hbm [thread:$0]  %s1143, 4096, %s1141, %s1129, 128, 128, 8
        $region60: #{tpu_custom_call.1} parent=43 // pred_fallthru
          _
      $region44: #{tpu_custom_call.1} parent=5 // pred_fallthru
        _
      %p1149 = scmp.le.s32.totalorder 2, %s19
      // Predicated region
      $region61: #{tpu_custom_call.1} parent=5 // pred_check
        %p1150 = pneg %p1149
      $region62: #{tpu_custom_call.1} parent=5 // pred_check_branch
        %1152 = sbr.rel (%p1150) target = $region64
      $region63: #{tpu_custom_call.1} parent=5 // pred_region
        %s1153 = ssub.s32 %s19, 2
        // Predicated region
        $region65: #{tpu_custom_call.1} parent=63 // pred_check
          %p1154 = pneg %p179
        $region66: #{tpu_custom_call.1} parent=63 // pred_check_branch
          %1156 = sbr.rel (%p1154) target = $region68
        $region67: #{tpu_custom_call.1} parent=63 // pred_region
          %s1157 = sand.u32 %s164, 1
          %s1158 = scalar_lea.sflag [#allocation5], %s1157
          %s1159 = sand.u32 %s164, 1
          %s1160 = smul.addr %s1159, 256
          %s1161 = scalar_lea.vmem [#allocation9], %s1160
          %1162 = dma.done %s1158, 4096
        $region68: #{tpu_custom_call.1} parent=63 // pred_fallthru
          _
      $region64: #{tpu_custom_call.1} parent=5 // pred_fallthru
        _
    $region6: #{tpu_custom_call.1} parent=1 // loop_footer
      %s23 = sadd.s32 1, %s19
    $region7: #{tpu_custom_call.1} parent=1 // loop_footer_branch
      %18 = sbr.rel target = $region3
    $region8: #{tpu_custom_call.1} parent=1 // loop_exit
      _
    %1163 = vsyncpa [#allocation4], 1
    %s1164 = scalar_lea.sflag [#allocation4], 1
    %1165 = vsyncpa %s1164, 1
    %1166 = vsyncpa [#allocation7], 1
    %1167 = vsyncpa [#allocation5], 1
    %s1168 = scalar_lea.sflag [#allocation5], 1
    %1169 = vsyncpa %s1168, 1

</llo_original>
